<compile_context>
chip_gen: v7x
topology: tpu7x:2x2x1
jax: 0.10.0
libtpu: 0.0.40
codegen_flags: <defaults>
</compile_context>

<pallas_src>
import jax
import jax.numpy as jnp
from jax.experimental import pallas as pl
from jax.experimental.pallas import tpu as pltpu

# --- deterministic quantization parameters (stand in for the torch
#     nn.quantized.Quantize modules and the mul's output scale/zero_point) ---
QMIN, QMAX = 0.0, 255.0          # quint8
LEFT_SCALE, LEFT_ZP = 0.2, 5.0
RIGHT_SCALE, RIGHT_ZP = 0.2, 5.0
OUT_SCALE, OUT_ZP = 0.05, 3.0

# folded constants (no divides inside the kernel)
LEFT_INV = 1.0 / LEFT_SCALE
RIGHT_INV = 1.0 / RIGHT_SCALE
K = LEFT_SCALE * RIGHT_SCALE / OUT_SCALE   # requant multiplier on (qx-zl)*(qy-zr)

# zero-points folded into the clip bounds (exact: ZPs are small integers)
L_LO, L_HI = QMIN - LEFT_ZP, QMAX - LEFT_ZP
R_LO, R_HI = QMIN - RIGHT_ZP, QMAX - RIGHT_ZP
O_LO, O_HI = QMIN - OUT_ZP, QMAX - OUT_ZP

# tiling parameters
LANE_CHOICES = (1024, 512, 256, 128)   # widest lane count dividing n wins
MAX_BLOCK_ELEMS = 1 << 20              # 1M f32 = 4 MiB per block
SMALL_ELEMS = 64 * 1024                # <= 256 KiB f32 -> single block, no grid

_GRID_PARAMS = pltpu.CompilerParams(
    dimension_semantics=("parallel",),          # megacore sharding on v7x
    vmem_limit_bytes=32 * 1024 * 1024,          # 3 arrays * 2 bufs * 4 MiB = 24 MiB
)


# ----------------------------- kernels --------------------------------------
def qmul_kernel(x_ref, y_ref, o_ref):
    # dx == qx - LEFT_ZP, dy == qy - RIGHT_ZP (zero-points folded into bounds)
    dx = jnp.clip(jnp.round(x_ref[...] * LEFT_INV), L_LO, L_HI)
    dy = jnp.clip(jnp.round(y_ref[...] * RIGHT_INV), R_LO, R_HI)
    o_ref[...] = jnp.clip(jnp.round(dx * dy * K), O_LO, O_HI) * OUT_SCALE


def qmul_scalar_kernel(s_ref, x_ref, o_ref):
    # quantized.mul(qtensor, scalar) only rescales; dequantized result is
    # fake_quant(x) * scalar exactly.  s_ref[0] == LEFT_SCALE * scalar,
    # precomputed in the wrapper (one SMEM read per grid step).
    s = s_ref[0]
    dx = jnp.clip(jnp.round(x_ref[...] * LEFT_INV), L_LO, L_HI)
    o_ref[...] = dx * s


# --------------------------- layout helpers ----------------------------------
def _pick_lanes(n):
    for lanes in LANE_CHOICES:
        if n % lanes == 0:
            return lanes
    return None


def _to_slab(x):
    """Flatten to f32 and reshape to a lane-dense (rows, lanes) slab.

    Avoids padding whenever n is a multiple of 128 (the common case); padding
    (an extra HBM pass) only remains as a fallback for ragged sizes.
    """
    n = x.size
    flat = jnp.ravel(x).astype(jnp.float32)
    lanes = _pick_lanes(n)
    if lanes is None:
        # TODO(synk): handle the <128-element tail in-kernel (masked store /
        # pl.BoundedSlice) instead of a full pad + un-pad HBM round-trip.
        pad = (-n) % 128
        flat = jnp.pad(flat, (0, pad))
        return flat.reshape(-1, 128), n, True
    return flat.reshape(-1, lanes), n, False


def _from_slab(out, n, padded, shape):
    if padded:
        return out.reshape(-1)[:n].reshape(shape)
    return out.reshape(shape)


def _block_rows(rows, lanes):
    """Block rows: <= 4 MiB per block, multiple of 8, and small enough that the
    grid has at least 2 steps (keeps both v7x TensorCores busy)."""
    cap = max(8, MAX_BLOCK_ELEMS // lanes)
    half = max(8, (((rows + 1) // 2) + 7) // 8 * 8)   # ceil(rows/2) rounded to 8
    return min(cap, half)


# ------------------------------ wrapper --------------------------------------
def quantized_mul(x, other):
    """Pallas implementation of SimpleQuantizedMulModel.forward."""
    n = x.size

    if jnp.ndim(other) == 0:
        # ---- scalar `other` branch (other.size() == torch.Size([])) ----
        eff = (jnp.asarray(other, jnp.float32) * LEFT_SCALE).reshape(1)
        x2, n, padded = _to_slab(x)
        rows, lanes = x2.shape

        if n <= SMALL_ELEMS:
            out = pl.pallas_call(
                qmul_scalar_kernel,
                out_shape=jax.ShapeDtypeStruct(x2.shape, jnp.float32),
                in_specs=[
                    pl.BlockSpec(memory_space=pltpu.MemorySpace.SMEM),
                    pl.BlockSpec(memory_space=pltpu.MemorySpace.VMEM),
                ],
                out_specs=pl.BlockSpec(memory_space=pltpu.MemorySpace.VMEM),
            )(eff, x2)
            return _from_slab(out, n, padded, x.shape)

        br = _block_rows(rows, lanes)
        grid = (pl.cdiv(rows, br),)
        blk = pl.BlockSpec((br, lanes), lambda i: (i, 0))
        out = pl.pallas_call(
            qmul_scalar_kernel,
            out_shape=jax.ShapeDtypeStruct(x2.shape, jnp.float32),
            grid=grid,
            in_specs=[pl.BlockSpec(memory_space=pltpu.MemorySpace.SMEM), blk],
            out_specs=blk,
            compiler_params=_GRID_PARAMS,
        )(eff, x2)
        return _from_slab(out, n, padded, x.shape)

    # ---- tensor-tensor branch ----
    # TODO(synk): general NumPy-style broadcasting between mismatched shapes is
    # not implemented; the reference test uses equal shapes.
    assert x.shape == other.shape, "broadcasting not supported in this kernel"

    x2, n, padded = _to_slab(x)
    y2, _, _ = _to_slab(other)
    rows, lanes = x2.shape

    if n <= SMALL_ELEMS:
        # single block, no grid: one DMA in per operand, one out.
        out = pl.pallas_call(
            qmul_kernel,
            out_shape=jax.ShapeDtypeStruct(x2.shape, jnp.float32),
        )(x2, y2)
        return _from_slab(out, n, padded, x.shape)

    br = _block_rows(rows, lanes)
    grid = (pl.cdiv(rows, br),)
    blk = pl.BlockSpec((br, lanes), lambda i: (i, 0))
    out = pl.pallas_call(
        qmul_kernel,
        out_shape=jax.ShapeDtypeStruct(x2.shape, jnp.float32),
        grid=grid,
        in_specs=[blk, blk],
        out_specs=blk,
        compiler_params=_GRID_PARAMS,
    )(x2, y2)
    return _from_slab(out, n, padded, x.shape)


# --------------------------- pure-jnp reference -------------------------------
def _reference(x, other):
    # written in the un-folded (original torch-like) form to validate the
    # zero-point folding inside the kernel.
    if jnp.ndim(other) == 0:
        qx = jnp.clip(jnp.round(x * LEFT_INV) + LEFT_ZP, QMIN, QMAX)
        return (qx - LEFT_ZP) * (LEFT_SCALE * other)
    qx = jnp.clip(jnp.round(x * LEFT_INV) + LEFT_ZP, QMIN, QMAX)
    qy = jnp.clip(jnp.round(other * RIGHT_INV) + RIGHT_ZP, QMIN, QMAX)
    qo = jnp.clip(jnp.round((qx - LEFT_ZP) * (qy - RIGHT_ZP) * K) + OUT_ZP,
                  QMIN, QMAX)
    return (qo - OUT_ZP) * OUT_SCALE


if __name__ == "__main__":
    key = jax.random.PRNGKey(0)
    k1, k2, k3, k4 = jax.random.split(key, 4)

    # small NCHW activations (exercise the single-block path)
    x = jax.random.uniform(k1, (2, 4, 16, 16), jnp.float32, 0.0, 5.0)
    y = jax.random.uniform(k2, (2, 4, 16, 16), jnp.float32, 0.0, 5.0)

    out = quantized_mul(x, y)
    jax.block_until_ready(out)
    assert out.shape == x.shape
    # allow one quantization step of slack at exact rounding boundaries
    assert float(jnp.max(jnp.abs(out - _reference(x, y)))) <= OUT_SCALE + 1e-6

    # scalar-`other` branch (small path)
    out_s = quantized_mul(x, jnp.float32(2.5))
    jax.block_until_ready(out_s)
    assert float(jnp.max(jnp.abs(out_s - _reference(x, jnp.float32(2.5))))) <= 1e-5

    # medium input exercising the gridded path: 1M f32 -> (1024, 1024) slab,
    # two (512, 1024) blocks -> both v7x TensorCores get work, no padding.
    xl = jax.random.uniform(k3, (2, 8, 256, 256), jnp.float32, 0.0, 5.0)
    yl = jax.random.uniform(k4, (2, 8, 256, 256), jnp.float32, 0.0, 5.0)
    out_l = quantized_mul(xl, yl)
    jax.block_until_ready(out_l)
    assert out_l.shape == xl.shape
    assert float(jnp.max(jnp.abs(out_l - _reference(xl, yl)))) <= OUT_SCALE + 1e-6

    # gridded scalar path
    out_ls = quantized_mul(xl, jnp.float32(0.75))
    jax.block_until_ready(out_ls)
    assert float(jnp.max(jnp.abs(out_ls - _reference(xl, jnp.float32(0.75))))) <= 1e-5

    print("KERNEL_OK")
</pallas_src>

<mosaic_0001>
module attributes {stable_mosaic.version = 11 : i64} {
  func.func @qmul_kernel(%arg0: memref<2x1024xf32, #tpu.memory_space<vmem>>, %arg1: memref<2x1024xf32, #tpu.memory_space<vmem>>, %arg2: memref<2x1024xf32, #tpu.memory_space<vmem>>) attributes {dimension_semantics = [], scalar_prefetch = 0 : i64, scratch_operands = 0 : i64, tpu.core_type = #tpu.core_type<tc>} {
    %c0 = arith.constant 0 : index
    %c0_0 = arith.constant 0 : index
    %0 = vector.load %arg0[%c0, %c0_0] : memref<2x1024xf32, #tpu.memory_space<vmem>>, vector<2x1024xf32>
    %cst = arith.constant 5.000000e+00 : f32
    %1 = vector.broadcast %cst : f32 to vector<2x1024xf32>
    %2 = arith.mulf %0, %1 : vector<2x1024xf32>
    %3 = math.roundeven %2 : vector<2x1024xf32>
    %cst_1 = arith.constant -5.000000e+00 : f32
    %cst_2 = arith.constant 2.500000e+02 : f32
    %4 = vector.broadcast %cst_1 : f32 to vector<2x1024xf32>
    %5 = arith.maximumf %4, %3 : vector<2x1024xf32>
    %6 = vector.broadcast %cst_2 : f32 to vector<2x1024xf32>
    %7 = arith.minimumf %6, %5 : vector<2x1024xf32>
    %c0_3 = arith.constant 0 : index
    %c0_4 = arith.constant 0 : index
    %8 = vector.load %arg1[%c0_3, %c0_4] : memref<2x1024xf32, #tpu.memory_space<vmem>>, vector<2x1024xf32>
    %cst_5 = arith.constant 5.000000e+00 : f32
    %9 = vector.broadcast %cst_5 : f32 to vector<2x1024xf32>
    %10 = arith.mulf %8, %9 : vector<2x1024xf32>
    %11 = math.roundeven %10 : vector<2x1024xf32>
    %cst_6 = arith.constant -5.000000e+00 : f32
    %cst_7 = arith.constant 2.500000e+02 : f32
    %12 = vector.broadcast %cst_6 : f32 to vector<2x1024xf32>
    %13 = arith.maximumf %12, %11 : vector<2x1024xf32>
    %14 = vector.broadcast %cst_7 : f32 to vector<2x1024xf32>
    %15 = arith.minimumf %14, %13 : vector<2x1024xf32>
    %16 = arith.mulf %7, %15 : vector<2x1024xf32>
    %cst_8 = arith.constant 8.000000e-01 : f32
    %17 = vector.broadcast %cst_8 : f32 to vector<2x1024xf32>
    %18 = arith.mulf %16, %17 : vector<2x1024xf32>
    %19 = math.roundeven %18 : vector<2x1024xf32>
    %cst_9 = arith.constant -3.000000e+00 : f32
    %cst_10 = arith.constant 2.520000e+02 : f32
    %20 = vector.broadcast %cst_9 : f32 to vector<2x1024xf32>
    %21 = arith.maximumf %20, %19 : vector<2x1024xf32>
    %22 = vector.broadcast %cst_10 : f32 to vector<2x1024xf32>
    %23 = arith.minimumf %22, %21 : vector<2x1024xf32>
    %cst_11 = arith.constant 5.000000e-02 : f32
    %24 = vector.broadcast %cst_11 : f32 to vector<2x1024xf32>
    %25 = arith.mulf %23, %24 : vector<2x1024xf32>
    %c0_12 = arith.constant 0 : index
    %c0_13 = arith.constant 0 : index
    %26 = vector.load %arg2[%c0_12, %c0_13] : memref<2x1024xf32, #tpu.memory_space<vmem>>, vector<2x1024xf32>
    tpu.vector_store %arg2[%c0_12, %c0_13], %25 {strides = array<i32>} : memref<2x1024xf32, #tpu.memory_space<vmem>>, vector<2x1024xf32>,
    return
  }
}

</mosaic_0001>

<llo_original>
// kernel: tpu_custom_call.1
$region0: #{tpu_custom_call.1}
  #allocation0 [shape = 'u32[]', space=smem, size = 0x4, offset = 0x4, fixed_abs, tag = 'smem constant byte address 0x4 - core index']
  #allocation1 [shape = 'u32[144,128]{1,0:T(1,128)}', space=vmem, size = 0x12000, scoped, tag = 'internal scratch']
  %s0 = inlined_call_operand.hbm [shape: f32[2,1024], index: 0, kind: input, shape index: {}]
  %s1 = inlined_call_operand.hbm [shape: f32[2,1024], index: 1, kind: input, shape index: {}]
  %s2 = inlined_call_operand.hbm [shape: f32[2,1024], index: 2, kind: output, shape index: {}]
  %s3 = sld [smem:[#allocation0]]
  $region26: #{tpu_custom_call.1} parent=0
    _
  %s5 = ssub.s32 1, %s3
  %s6 = scalar_select 0, %s5, %s3
  $region1: #{tpu_custom_call.1} parent=0
    #allocation2 [shape = 'u8[8192]{0}', space=vmem, size = 0x2000, scoped, tag = 'input window, operand 0, single buffered']
    #allocation3 [shape = 's32[1]{0}', space=sflag, size = 0x4, scoped, tag = 'scoped memory for tpu_custom_call.1']
    #allocation4 [shape = 's32[1]{0}', space=sflag, size = 0x4, scoped, tag = 'scoped memory for tpu_custom_call.1']
    #allocation5 [shape = 'u8[8192]{0}', space=vmem, size = 0x2000, scoped, tag = 'input window, operand 1, single buffered']
    #allocation6 [shape = 's32[1]{0}', space=sflag, size = 0x4, scoped, tag = 'scoped memory for tpu_custom_call.1']
    #allocation7 [shape = 'u8[8192]{0}', space=vmem, size = 0x2000, scoped, tag = 'output window, operand 0, single buffered']
    %7 = vsyncpa [#allocation3], 0
    %8 = vsyncpa [#allocation6], 0
    %9 = vsyncpa [#allocation4], 0
    // Predicated region
    $region2: #{tpu_custom_call.1} parent=1 // pred_check
      _
    $region3: #{tpu_custom_call.1} parent=1 // pred_check_branch
      %11 = sbr.rel (0) target = $region5
    $region4: #{tpu_custom_call.1} parent=1 // pred_region
      %s13 = ssub.s32 256, 256
      %14 = vsyncadd [#allocation3], %s13
      %s16 = sshll.u32 [#allocation2], 4
      %s17 = int_to_ptr.vmem [resolvable:$true] %s16
      %19 = dma.hbm_to_vmem [thread:$0]  %s0, 256, %s17, [#allocation3]
    $region5: #{tpu_custom_call.1} parent=1 // pred_fallthru
      _
    // Predicated region
    $region6: #{tpu_custom_call.1} parent=1 // pred_check
      _
    $region7: #{tpu_custom_call.1} parent=1 // pred_check_branch
      %21 = sbr.rel (0) target = $region9
    $region8: #{tpu_custom_call.1} parent=1 // pred_region
      %s23 = ssub.s32 256, 256
      %24 = vsyncadd [#allocation6], %s23
      %s26 = sshll.u32 [#allocation5], 4
      %s27 = int_to_ptr.vmem [resolvable:$true] %s26
      %29 = dma.hbm_to_vmem [thread:$0]  %s1, 256, %s27, [#allocation6]
    $region9: #{tpu_custom_call.1} parent=1 // pred_fallthru
      _
    // Predicated region
    $region10: #{tpu_custom_call.1} parent=1 // pred_check
      _
    $region11: #{tpu_custom_call.1} parent=1 // pred_check_branch
      %31 = sbr.rel (0) target = $region13
    $region12: #{tpu_custom_call.1} parent=1 // pred_region
      %32 = dma.done [#allocation3], 256
    $region13: #{tpu_custom_call.1} parent=1 // pred_fallthru
      _
    // Predicated region
    $region14: #{tpu_custom_call.1} parent=1 // pred_check
      _
    $region15: #{tpu_custom_call.1} parent=1 // pred_check_branch
      %34 = sbr.rel (0) target = $region17
    $region16: #{tpu_custom_call.1} parent=1 // pred_region
      %35 = dma.done [#allocation6], 256
    $region17: #{tpu_custom_call.1} parent=1 // pred_fallthru
      _
    %v36 = vld [vmem:[#allocation2] sm:$0xff]
    %v37 = vld [vmem:[#allocation2 + $0x8] sm:$0xff]
    %v38 = vmul.f32 %v36, 5.0
    %v39 = vmul.f32 %v37, 5.0
    %v40 = vround.ne.pseudo %v38
    %v41 = vround.ne.pseudo %v39
    %v42 = vmax.f32 %v40, -5.0
    %v43 = vmax.f32 %v41, -5.0
    %v44 = vmin.f32 %v42, 250.0
    %v45 = vmin.f32 %v43, 250.0
    %v46 = vld [vmem:[#allocation5] sm:$0xff]
    %v47 = vld [vmem:[#allocation5 + $0x8] sm:$0xff]
    %v48 = vmul.f32 %v46, 5.0
    %v49 = vmul.f32 %v47, 5.0
    %v50 = vround.ne.pseudo %v48
    %v51 = vround.ne.pseudo %v49
    %v52 = vmax.f32 %v50, -5.0
    %v53 = vmax.f32 %v51, -5.0
    %v54 = vmin.f32 %v52, 250.0
    %v55 = vmin.f32 %v53, 250.0
    %v56 = vmul.f32 %v44, %v54
    %v57 = vmul.f32 %v45, %v55
    %v58 = vmul.f32 %v56, 0.8
    %v59 = vmul.f32 %v57, 0.8
    %v60 = vround.ne.pseudo %v58
    %v61 = vround.ne.pseudo %v59
    %v62 = vmax.f32 %v60, -3.0
    %v63 = vmax.f32 %v61, -3.0
    %v64 = vmin.f32 %v62, 252.0
    %v65 = vmin.f32 %v63, 252.0
    %v66 = vmul.f32 %v64, 0.05
    %v67 = vmul.f32 %v65, 0.05
    %68 = vst [vmem:[#allocation7] sm:$0xff] %v66
    %69 = vst [vmem:[#allocation7 + $0x8] sm:$0xff] %v67
    // Predicated region
    $region18: #{tpu_custom_call.1} parent=1 // pred_check
      _
    $region19: #{tpu_custom_call.1} parent=1 // pred_check_branch
      %71 = sbr.rel (0) target = $region21
    $region20: #{tpu_custom_call.1} parent=1 // pred_region
      %s73 = ssub.s32 256, 256
      %74 = vsyncadd [#allocation4], %s73
      %s76 = sshll.u32 [#allocation7], 4
      %s77 = int_to_ptr.vmem [resolvable:$true] %s76
      %79 = dma.vmem_to_hbm [thread:$0]  %s77, 256, %s2, [#allocation4]
    $region21: #{tpu_custom_call.1} parent=1 // pred_fallthru
      _
    // Predicated region
    $region22: #{tpu_custom_call.1} parent=1 // pred_check
      _
    $region23: #{tpu_custom_call.1} parent=1 // pred_check_branch
      %81 = sbr.rel (0) target = $region25
    $region24: #{tpu_custom_call.1} parent=1 // pred_region
      %82 = dma.done [#allocation4], 256
    $region25: #{tpu_custom_call.1} parent=1 // pred_fallthru
      _
    %83 = vsyncpa [#allocation3], 1
    %84 = vsyncpa [#allocation6], 1
    %85 = vsyncpa [#allocation4], 1

</llo_original>
